<compile_context>
chip_gen: v7x
topology: tpu7x:2x2x1
jax: 0.10.0
libtpu: 0.0.40
codegen_flags: <defaults>
</compile_context>

<pallas_src>
import functools

import numpy as np
import jax
import jax.numpy as jnp
from jax.experimental import pallas as pl
from jax.experimental.pallas import tpu as pltpu

_LN10 = 2.302585092994046


def _round_up(a, b):
    return (a + b - 1) // b * b


# -----------------------------------------------------------------------------
# Parameter construction (init-time glue, mirrors ExtinctionModule.__init__ /
# _compute_extinction_law_grid with synthetic smooth curves).
# -----------------------------------------------------------------------------
def build_extinction_law(num_av, num_wavelength,
                         wl_min=0.3, wl_max=50.0,
                         av_min=0.0, av_max=10.0,
                         transition_width=0.02):
    log_wl_grid = np.linspace(np.log10(wl_min), np.log10(wl_max),
                              num_wavelength, dtype=np.float64)
    wl = 10.0 ** log_wl_grid
    av_grid = np.linspace(av_min, av_max, num_av, dtype=np.float64)

    ext_ccm89 = 1.0 + 2.5 / (wl + 0.5)
    ext_mcclure_low = 0.8 + 1.6 / (wl + 0.7)
    ext_mcclure_high = 0.9 + 1.9 / (wl + 0.6)

    A_ccm89, A_mcclure = 3.55, 7.75
    half = transition_width / 2.0

    law = np.ones((num_av, num_wavelength), dtype=np.float64)
    av = av_grid
    cond1 = av <= 3.0 - half
    cond2 = (av > 3.0 - half) & (av <= 3.0 + half)
    cond3 = (av > 3.0 + half) & (av <= 8.0 - half)
    cond4 = (av > 8.0 - half) & (av <= 8.0 + half)
    cond5 = av > 8.0 + half

    if cond1.any():
        law[cond1, :] = ext_ccm89[None, :] / A_ccm89
    if cond2.any():
        a2 = av[cond2][:, None]
        w_low = (a2 - 3.0 + half) / transition_width
        law[cond2, :] = (ext_ccm89[None, :] * (1.0 - w_low) / A_ccm89
                         + ext_mcclure_low[None, :] * w_low / A_mcclure)
    if cond3.any():
        law[cond3, :] = ext_mcclure_low[None, :] / A_mcclure
    if cond4.any():
        a4 = av[cond4][:, None]
        w_high = (a4 - 8.0 + half) / transition_width
        law[cond4, :] = (ext_mcclure_low[None, :] * (1.0 - w_high) / A_mcclure
                         + ext_mcclure_high[None, :] * w_high / A_mcclure)
    if cond5.any():
        law[cond5, :] = ext_mcclure_high[None, :] / A_mcclure

    return (law.astype(np.float32),
            log_wl_grid.astype(np.float32),
            av_grid.astype(np.float32))


# -----------------------------------------------------------------------------
# Pallas kernel: fused bilinear lerp + extinction factor + masked correction.
# Big refs are (TB, TN) blocks; fy / neg_scale are (TB, 1) per-batch columns.
# fxm carries the wavelength-axis lerp weight in [0, 1), or the 2.0 sentinel
# meaning "x >= 40um: pass y through unchanged".
# -----------------------------------------------------------------------------
def _extinction_kernel(y_ref, v00_ref, v01_ref, v10_ref, v11_ref,
                       fxm_ref, fy_ref, nls_ref, o_ref):
    fxm = fxm_ref[...]
    # wavelength-axis lerp of the two gathered law rows (4 corner values)
    v0 = v00_ref[...] + fxm * (v01_ref[...] - v00_ref[...])
    v1 = v10_ref[...] + fxm * (v11_ref[...] - v10_ref[...])
    # Av-axis lerp (per-batch fractional weight broadcast along lanes)
    sampled = v0 + fy_ref[...] * (v1 - v0)
    # 1 / 10**(0.4*sampled*Av)  ==  exp(-ln10*0.4*Av * sampled)   (one EUP op)
    ef_inv = jnp.exp(nls_ref[...] * sampled)
    y = y_ref[...]
    o_ref[...] = jnp.where(fxm < 1.5, y * ef_inv, y)


def extinction_forward(y, x, av, law, *, av_min, av_max,
                       log_wl_min, log_wl_max):
    """y, x: (batch, n_wave); av: (batch, 1); law: (num_av, num_wavelength)."""
    y = jnp.asarray(y, jnp.float32)
    x = jnp.asarray(x, jnp.float32)
    av = jnp.asarray(av, jnp.float32)
    law = jnp.asarray(law, jnp.float32)
    B, n_wave = y.shape
    if x.shape[0] == 1 and B > 1:                      # mirrors _validate_inputs
        x = jnp.broadcast_to(x, (B, n_wave))
    H, W = law.shape

    # ---- Av axis (grid_sample "y" coord): per-batch scalar index/weight -----
    av_flat = av[:, 0]
    gy = 2.0 * (av_flat - av_min) / (av_max - av_min) - 1.0
    iy = jnp.clip(((gy + 1.0) * H - 1.0) * 0.5, 0.0, float(H - 1))
    iy0 = jnp.floor(iy).astype(jnp.int32)              # clip before floor/cast
    fy = iy - iy0.astype(jnp.float32)
    iy1 = jnp.minimum(iy0 + 1, H - 1)

    # ---- wavelength axis (grid_sample "x" coord): per-(b, j) index/weight ---
    gx = 2.0 * (jnp.log10(x) - log_wl_min) / (log_wl_max - log_wl_min) - 1.0
    ix = jnp.clip(((gx + 1.0) * W - 1.0) * 0.5, 0.0, float(W - 1))
    ix0 = jnp.floor(ix).astype(jnp.int32)
    fx = ix - ix0.astype(jnp.float32)
    ix1 = jnp.minimum(ix0 + 1, W - 1)

    # Fold the x<40um mask into the wavelength weight: fx is always in [0, 1),
    # so 2.0 is an unambiguous "no extinction" sentinel.  This removes the x
    # array from the kernel's HBM streams entirely.
    fxm = jnp.where(x < 40.0, fx, jnp.float32(2.0))

    # ---- gather only the 4 bilinear corner values per output element --------
    # TODO(synk): the data-dependent table lookup stays as XLA gathers (no
    # efficient in-kernel lane gather on TPU); only 4*B*n_wave values of the
    # H*W table are touched.
    v00 = law[iy0[:, None], ix0]
    v01 = law[iy0[:, None], ix1]
    v10 = law[iy1[:, None], ix0]
    v11 = law[iy1[:, None], ix1]

    fy_col = fy[:, None]                               # (B, 1)
    neg_scale = (-_LN10 * 0.4) * av                    # (B, 1)

    # ---- tiling: lane-aligned blocks; pad only when shapes require it -------
    if B <= 128:
        TB = _round_up(B, 8)
        Bp = TB
    else:
        TB = 128
        Bp = _round_up(B, TB)
    if n_wave <= 1024:
        TN = _round_up(n_wave, 128)
        Np = TN
    else:
        TN = 1024
        Np = _round_up(n_wave, TN)

    def pad2(a):
        if Bp == B and Np == n_wave:
            return a
        return jnp.pad(a, ((0, Bp - B), (0, Np - n_wave)))

    def padc(a):
        if Bp == B:
            return a
        return jnp.pad(a, ((0, Bp - B), (0, 0)))

    big_inputs = [pad2(a) for a in (y, v00, v01, v10, v11, fxm)]
    col_inputs = [padc(a) for a in (fy_col, neg_scale)]

    big_spec = pl.BlockSpec((TB, TN), lambda i, j: (i, j))
    col_spec = pl.BlockSpec((TB, 1), lambda i, j: (i, 0))

    out = pl.pallas_call(
        _extinction_kernel,
        out_shape=jax.ShapeDtypeStruct((Bp, Np), jnp.float32),
        grid=(Bp // TB, Np // TN),
        in_specs=[big_spec] * 6 + [col_spec] * 2,
        out_specs=big_spec,
        compiler_params=pltpu.CompilerParams(
            dimension_semantics=("parallel", "parallel")),
    )(*big_inputs, *col_inputs)

    if Bp == B and Np == n_wave:
        return out
    return out[:B, :n_wave]


# -----------------------------------------------------------------------------
# Pure-JAX reference (same grid_sample semantics) for a correctness check.
# -----------------------------------------------------------------------------
def _ref_forward(y, x, av, law, av_min, av_max, log_wl_min, log_wl_max):
    H, W = law.shape
    gy = 2.0 * (av[:, 0] - av_min) / (av_max - av_min) - 1.0
    iy = jnp.clip(((gy + 1.0) * H - 1.0) * 0.5, 0.0, H - 1.0)
    iy0 = jnp.floor(iy).astype(jnp.int32)
    fy = iy - iy0
    iy1 = jnp.minimum(iy0 + 1, H - 1)
    row = (1.0 - fy)[:, None] * law[iy0] + fy[:, None] * law[iy1]

    gx = 2.0 * (jnp.log10(x) - log_wl_min) / (log_wl_max - log_wl_min) - 1.0
    ix = jnp.clip(((gx + 1.0) * W - 1.0) * 0.5, 0.0, W - 1.0)
    ix0 = jnp.floor(ix).astype(jnp.int32)
    fx = ix - ix0
    ix1 = jnp.minimum(ix0 + 1, W - 1)
    v0 = jnp.take_along_axis(row, ix0, axis=1)
    v1 = jnp.take_along_axis(row, ix1, axis=1)
    sampled = (1.0 - fx) * v0 + fx * v1

    ef = 10.0 ** (0.4 * sampled * av)
    return jnp.where(x < 40.0, y / ef, y)


if __name__ == "__main__":
    # Small demo sizes (the real module defaults to 10000x10000 tables).
    B, N_WAVE = 4, 128
    NUM_AV, NUM_WL = 256, 256
    WL_MIN, WL_MAX = 0.3, 50.0
    AV_MIN, AV_MAX = 0.0, 10.0

    law_np, log_wl_grid, av_grid = build_extinction_law(
        NUM_AV, NUM_WL, WL_MIN, WL_MAX, AV_MIN, AV_MAX)
    law = jnp.asarray(law_np)

    key = jax.random.PRNGKey(0)
    k1, k2, k3 = jax.random.split(key, 3)
    base = jnp.logspace(jnp.log10(0.4), jnp.log10(45.0), N_WAVE,
                        dtype=jnp.float32)               # spans the <40um mask
    jitter = 1.0 + 0.01 * jax.random.uniform(k1, (B, N_WAVE), dtype=jnp.float32)
    x = (base[None, :] * jitter).astype(jnp.float32)
    y = jax.random.uniform(k2, (B, N_WAVE), minval=0.5, maxval=2.0,
                           dtype=jnp.float32)
    av = jax.random.uniform(k3, (B, 1), minval=0.0, maxval=10.0,
                            dtype=jnp.float32)

    fwd = jax.jit(functools.partial(
        extinction_forward,
        av_min=float(av_grid.min()), av_max=float(av_grid.max()),
        log_wl_min=float(np.log10(WL_MIN)),
        log_wl_max=float(np.log10(WL_MAX))))

    out = jax.block_until_ready(fwd(y, x, av, law))

    ref = _ref_forward(
        y, x, av, law,
        float(av_grid.min()), float(av_grid.max()),
        float(np.log10(WL_MIN)), float(np.log10(WL_MAX)))
    np.testing.assert_allclose(np.asarray(out), np.asarray(ref),
                               rtol=5e-4, atol=1e-5)
    print("KERNEL_OK")
</pallas_src>

<mosaic_0001>
module attributes {stable_mosaic.version = 11 : i64} {
  func.func @_extinction_kernel(%arg0: i32, %arg1: i32, %arg2: memref<8x128xf32, #tpu.memory_space<vmem>>, %arg3: memref<8x128xf32, #tpu.memory_space<vmem>>, %arg4: memref<8x128xf32, #tpu.memory_space<vmem>>, %arg5: memref<8x128xf32, #tpu.memory_space<vmem>>, %arg6: memref<8x128xf32, #tpu.memory_space<vmem>>, %arg7: memref<8x128xf32, #tpu.memory_space<vmem>>, %arg8: memref<8x1xf32, #tpu.memory_space<vmem>>, %arg9: memref<8x1xf32, #tpu.memory_space<vmem>>, %arg10: memref<8x128xf32, #tpu.memory_space<vmem>>) attributes {dimension_semantics = [#tpu.dimension_semantics<parallel>, #tpu.dimension_semantics<parallel>], iteration_bounds = array<i64: 1, 1>, scalar_prefetch = 0 : i64, scratch_operands = 0 : i64, tpu.core_type = #tpu.core_type<tc>, window_params = [{transform_indices = @transform_0, window_bounds = array<i64: 8, 128>}, {transform_indices = @transform_1, window_bounds = array<i64: 8, 128>}, {transform_indices = @transform_2, window_bounds = array<i64: 8, 128>}, {transform_indices = @transform_3, window_bounds = array<i64: 8, 128>}, {transform_indices = @transform_4, window_bounds = array<i64: 8, 128>}, {transform_indices = @transform_5, window_bounds = array<i64: 8, 128>}, {transform_indices = @transform_6, window_bounds = array<i64: 8, 1>}, {transform_indices = @transform_7, window_bounds = array<i64: 8, 1>}, {transform_indices = @transform_8, window_bounds = array<i64: 8, 128>}]} {
    %c0 = arith.constant 0 : index
    %c0_0 = arith.constant 0 : index
    %0 = vector.load %arg7[%c0, %c0_0] : memref<8x128xf32, #tpu.memory_space<vmem>>, vector<8x128xf32>
    %c0_1 = arith.constant 0 : index
    %c0_2 = arith.constant 0 : index
    %1 = vector.load %arg3[%c0_1, %c0_2] : memref<8x128xf32, #tpu.memory_space<vmem>>, vector<8x128xf32>
    %c0_3 = arith.constant 0 : index
    %c0_4 = arith.constant 0 : index
    %2 = vector.load %arg4[%c0_3, %c0_4] : memref<8x128xf32, #tpu.memory_space<vmem>>, vector<8x128xf32>
    %c0_5 = arith.constant 0 : index
    %c0_6 = arith.constant 0 : index
    %3 = vector.load %arg3[%c0_5, %c0_6] : memref<8x128xf32, #tpu.memory_space<vmem>>, vector<8x128xf32>
    %4 = arith.subf %2, %3 : vector<8x128xf32>
    %5 = arith.mulf %0, %4 : vector<8x128xf32>
    %6 = arith.addf %1, %5 : vector<8x128xf32>
    %c0_7 = arith.constant 0 : index
    %c0_8 = arith.constant 0 : index
    %7 = vector.load %arg5[%c0_7, %c0_8] : memref<8x128xf32, #tpu.memory_space<vmem>>, vector<8x128xf32>
    %c0_9 = arith.constant 0 : index
    %c0_10 = arith.constant 0 : index
    %8 = vector.load %arg6[%c0_9, %c0_10] : memref<8x128xf32, #tpu.memory_space<vmem>>, vector<8x128xf32>
    %c0_11 = arith.constant 0 : index
    %c0_12 = arith.constant 0 : index
    %9 = vector.load %arg5[%c0_11, %c0_12] : memref<8x128xf32, #tpu.memory_space<vmem>>, vector<8x128xf32>
    %10 = arith.subf %8, %9 : vector<8x128xf32>
    %11 = arith.mulf %0, %10 : vector<8x128xf32>
    %12 = arith.addf %7, %11 : vector<8x128xf32>
    %c0_13 = arith.constant 0 : index
    %c0_14 = arith.constant 0 : index
    %13 = vector.load %arg8[%c0_13, %c0_14] : memref<8x1xf32, #tpu.memory_space<vmem>>, vector<8x1xf32>
    %14 = arith.subf %12, %6 : vector<8x128xf32>
    %15 = vector.broadcast %13 : vector<8x1xf32> to vector<8x128xf32>
    %16 = arith.mulf %15, %14 : vector<8x128xf32>
    %17 = arith.addf %6, %16 : vector<8x128xf32>
    %c0_15 = arith.constant 0 : index
    %c0_16 = arith.constant 0 : index
    %18 = vector.load %arg9[%c0_15, %c0_16] : memref<8x1xf32, #tpu.memory_space<vmem>>, vector<8x1xf32>
    %19 = vector.broadcast %18 : vector<8x1xf32> to vector<8x128xf32>
    %20 = arith.mulf %19, %17 : vector<8x128xf32>
    %21 = math.exp %20 : vector<8x128xf32>
    %c0_17 = arith.constant 0 : index
    %c0_18 = arith.constant 0 : index
    %22 = vector.load %arg2[%c0_17, %c0_18] : memref<8x128xf32, #tpu.memory_space<vmem>>, vector<8x128xf32>
    %cst = arith.constant 1.500000e+00 : f32
    %23 = vector.broadcast %cst : f32 to vector<8x128xf32>
    %24 = arith.cmpf olt, %0, %23 : vector<8x128xf32>
    %25 = arith.mulf %22, %21 : vector<8x128xf32>
    %26 = arith.select %24, %25, %22 : vector<8x128xi1>, vector<8x128xf32>
    %c0_19 = arith.constant 0 : index
    %c0_20 = arith.constant 0 : index
    %27 = vector.load %arg10[%c0_19, %c0_20] : memref<8x128xf32, #tpu.memory_space<vmem>>, vector<8x128xf32>
    tpu.vector_store %arg10[%c0_19, %c0_20], %26 {strides = array<i32>} : memref<8x128xf32, #tpu.memory_space<vmem>>, vector<8x128xf32>,
    return
  }
  func.func @transform_0(%arg0: i32, %arg1: i32) -> (i32, i32) {
    %c0_i32 = arith.constant 0 : i32
    return %arg0, %arg1 : i32, i32
  }
  func.func @transform_1(%arg0: i32, %arg1: i32) -> (i32, i32) {
    %c0_i32 = arith.constant 0 : i32
    return %arg0, %arg1 : i32, i32
  }
  func.func @transform_2(%arg0: i32, %arg1: i32) -> (i32, i32) {
    %c0_i32 = arith.constant 0 : i32
    return %arg0, %arg1 : i32, i32
  }
  func.func @transform_3(%arg0: i32, %arg1: i32) -> (i32, i32) {
    %c0_i32 = arith.constant 0 : i32
    return %arg0, %arg1 : i32, i32
  }
  func.func @transform_4(%arg0: i32, %arg1: i32) -> (i32, i32) {
    %c0_i32 = arith.constant 0 : i32
    return %arg0, %arg1 : i32, i32
  }
  func.func @transform_5(%arg0: i32, %arg1: i32) -> (i32, i32) {
    %c0_i32 = arith.constant 0 : i32
    return %arg0, %arg1 : i32, i32
  }
  func.func @transform_6(%arg0: i32, %arg1: i32) -> (i32, i32) {
    %c0_i32 = arith.constant 0 : i32
    %c0_i32_0 = arith.constant 0 : i32
    return %arg0, %c0_i32 : i32, i32
  }
  func.func @transform_7(%arg0: i32, %arg1: i32) -> (i32, i32) {
    %c0_i32 = arith.constant 0 : i32
    %c0_i32_0 = arith.constant 0 : i32
    return %arg0, %c0_i32 : i32, i32
  }
  func.func @transform_8(%arg0: i32, %arg1: i32) -> (i32, i32) {
    %c0_i32 = arith.constant 0 : i32
    return %arg0, %arg1 : i32, i32
  }
}

</mosaic_0001>

<llo_original>
// kernel: extinction_forward.1
$region0: #{extinction_forward.1}
  #allocation0 [shape = 'u32[]', space=smem, size = 0x4, offset = 0x4, fixed_abs, tag = 'smem constant byte address 0x4 - core index']
  #allocation1 [shape = 'u32[144,128]{1,0:T(1,128)}', space=vmem, size = 0x12000, scoped, tag = 'internal scratch']
  %s0 = inlined_call_operand.vmem [shape: f32[8,128], index: 0, kind: input, shape index: {}]
  %s1 = inlined_call_operand.vmem [shape: f32[8,128], index: 1, kind: input, shape index: {}]
  %s2 = inlined_call_operand.vmem [shape: f32[8,128], index: 2, kind: input, shape index: {}]
  %s3 = inlined_call_operand.vmem [shape: f32[8,128], index: 3, kind: input, shape index: {}]
  %s4 = inlined_call_operand.vmem [shape: f32[8,128], index: 4, kind: input, shape index: {}]
  %s5 = inlined_call_operand.vmem [shape: f32[8,128], index: 5, kind: input, shape index: {}]
  %s6 = inlined_call_operand.vmem [shape: f32[8,1], index: 6, kind: input, shape index: {}]
  %s7 = inlined_call_operand.vmem [shape: f32[8,1], index: 7, kind: input, shape index: {}]
  %s8 = inlined_call_operand.vmem [shape: f32[8,128], index: 8, kind: output, shape index: {}]
  %s9 = sld [smem:[#allocation0]]
  $region42: #{extinction_forward.1} parent=0
    _
  %s11 = ssub.s32 1, %s9
  %s12 = scalar_select 0, %s11, %s9
  // Predicated region
  $region2: #{extinction_forward.1} parent=0 // pred_check
    _
  $region3: #{extinction_forward.1} parent=0 // pred_check_branch
    %14 = sbr.rel (0) target = $region5
  $region4: #{extinction_forward.1} parent=0 // pred_region
    _
  $region5: #{extinction_forward.1} parent=0 // pred_fallthru
    _
  // Predicated region
  $region6: #{extinction_forward.1} parent=0 // pred_check
    _
  $region7: #{extinction_forward.1} parent=0 // pred_check_branch
    %16 = sbr.rel (0) target = $region9
  $region8: #{extinction_forward.1} parent=0 // pred_region
    _
  $region9: #{extinction_forward.1} parent=0 // pred_fallthru
    _
  // Predicated region
  $region10: #{extinction_forward.1} parent=0 // pred_check
    _
  $region11: #{extinction_forward.1} parent=0 // pred_check_branch
    %18 = sbr.rel (0) target = $region13
  $region12: #{extinction_forward.1} parent=0 // pred_region
    _
  $region13: #{extinction_forward.1} parent=0 // pred_fallthru
    _
  // Predicated region
  $region14: #{extinction_forward.1} parent=0 // pred_check
    _
  $region15: #{extinction_forward.1} parent=0 // pred_check_branch
    %20 = sbr.rel (0) target = $region17
  $region16: #{extinction_forward.1} parent=0 // pred_region
    _
  $region17: #{extinction_forward.1} parent=0 // pred_fallthru
    _
  // Predicated region
  $region18: #{extinction_forward.1} parent=0 // pred_check
    _
  $region19: #{extinction_forward.1} parent=0 // pred_check_branch
    %22 = sbr.rel (0) target = $region21
  $region20: #{extinction_forward.1} parent=0 // pred_region
    _
  $region21: #{extinction_forward.1} parent=0 // pred_fallthru
    _
  // Predicated region
  $region22: #{extinction_forward.1} parent=0 // pred_check
    _
  $region23: #{extinction_forward.1} parent=0 // pred_check_branch
    %24 = sbr.rel (0) target = $region25
  $region24: #{extinction_forward.1} parent=0 // pred_region
    _
  $region25: #{extinction_forward.1} parent=0 // pred_fallthru
    _
  // Predicated region
  $region26: #{extinction_forward.1} parent=0 // pred_check
    _
  $region27: #{extinction_forward.1} parent=0 // pred_check_branch
    %26 = sbr.rel (0) target = $region29
  $region28: #{extinction_forward.1} parent=0 // pred_region
    _
  $region29: #{extinction_forward.1} parent=0 // pred_fallthru
    _
  // Predicated region
  $region30: #{extinction_forward.1} parent=0 // pred_check
    _
  $region31: #{extinction_forward.1} parent=0 // pred_check_branch
    %28 = sbr.rel (0) target = $region33
  $region32: #{extinction_forward.1} parent=0 // pred_region
    _
  $region33: #{extinction_forward.1} parent=0 // pred_fallthru
    _
  %v29 = vld [vmem:[%s5] sm:$0xff]
  %v30 = vld [vmem:[%s1] sm:$0xff]
  %v31 = vld [vmem:[%s2] sm:$0xff]
  %v32 = vsub.f32 %v31, %v30
  %v33 = vmul.f32 %v29, %v32
  %v34 = vadd.f32 %v30, %v33
  %v35 = vld [vmem:[%s3] sm:$0xff]
  %v36 = vld [vmem:[%s4] sm:$0xff]
  %v37 = vsub.f32 %v36, %v35
  %v38 = vmul.f32 %v29, %v37
  %v39 = vadd.f32 %v35, %v38
  %v40 = vld [vmem:[%s6] sm:$0xff]
  %v41 = vsub.f32 %v39, %v34
  %43 = vset.pattern.permute.xlu0 0
  %44 = vperm.xlu0 %43, %v40
  %v45 = vpop.permute.xlu0 %44
  %v47 = vmul.f32 %v45, %v41
  %v48 = vadd.f32 %v34, %v47
  %v49 = vld [vmem:[%s7] sm:$0xff]
  %51 = vset.pattern.permute.xlu0 0
  %52 = vperm.xlu0 %51, %v49
  %v53 = vpop.permute.xlu0 %52
  %v55 = vmul.f32 %v53, %v48
  %v56 = vmul.f32 %v55, 1.442695
  %v57 = vpow.pop %v56
  %v58 = vld [vmem:[%s0] sm:$0xff]
  %vm59 = vcmp.lt.f32.partialorder %v29, 1.5
  %v60 = vmul.f32 %v58, %v57
  %v61 = vsel %vm59, %v60, %v58
  %62 = vst [vmem:[%s8] sm:$0xff] %v61
  // Predicated region
  $region34: #{extinction_forward.1} parent=0 // pred_check
    _
  $region35: #{extinction_forward.1} parent=0 // pred_check_branch
    %64 = sbr.rel (0) target = $region37
  $region36: #{extinction_forward.1} parent=0 // pred_region
    _
  $region37: #{extinction_forward.1} parent=0 // pred_fallthru
    _
  // Predicated region
  $region38: #{extinction_forward.1} parent=0 // pred_check
    _
  $region39: #{extinction_forward.1} parent=0 // pred_check_branch
    %66 = sbr.rel (0) target = $region41
  $region40: #{extinction_forward.1} parent=0 // pred_region
    _
  $region41: #{extinction_forward.1} parent=0 // pred_fallthru
    _

</llo_original>
